<compile_context>
chip_gen: v7x
topology: tpu7x:2x2x1
jax: 0.10.0
libtpu: 0.0.40
codegen_flags: <defaults>
</compile_context>

<pallas_src>
import jax
import jax.numpy as jnp
from jax import lax
from jax.experimental import pallas as pl
from jax.experimental.pallas import tpu as pltpu


def _round_up(x, m):
    return ((x + m - 1) // m) * m


def _disc_kernel(z_ref, w1_ref, b1_ref, w2_ref, b2_ref, out_ref):
    """One batch tile of the discriminator.

    z_ref  : [TB, L]  latent tile, natural PyTorch layout (f32 or bf16)
    w1_ref : [nf, L]  first-layer weight, PyTorch layout (matches z dtype)
    b1_ref : [nf, 1]  first-layer bias as a column (f32)
    w2_ref : [1,  nf] second-layer weight, PyTorch layout (f32)
    b2_ref : [1,  1]  second-layer bias (SMEM scalar, f32)
    out_ref: [1,  TB] lane-dense sigmoid output (f32)
    """
    # First linear on the MXU, contracting the latent axis of both operands:
    # [nf, L] x [TB, L] -> [nf, TB].  Batch lands on lanes with no transpose
    # of the streamed z tile; accumulation is f32 regardless of input dtype.
    ht = lax.dot_general(
        w1_ref[...], z_ref[...],
        dimension_numbers=(((1,), (1,)), ((), ())),
        preferred_element_type=jnp.float32)
    ht = ht + b1_ref[...]                      # broadcast [nf, 1] over lanes
    # LeakyReLU(0.2) in f32 (VPU).
    ht = jnp.where(ht > 0, ht, 0.2 * ht)
    # Second linear: [1, nf] @ [nf, TB] -> [1, TB] (lane-dense N dimension).
    logit = jnp.dot(w2_ref[...], ht, preferred_element_type=jnp.float32)
    logit = logit + b2_ref[0, 0]               # scalar bias from SMEM
    # Sigmoid: exp on EUP, approx reciprocal on EUP.
    denom = 1.0 + jnp.exp(-logit)
    out_ref[...] = pl.reciprocal(denom, approx=True).astype(out_ref.dtype)


def discriminator_forward(z, w1, b1, w2, b2, *, block_b=4096):
    """AAE discriminator forward.

    z  : [B, latent_dim]  f32 (or bf16 if the producer already emits bf16)
    w1 : [nf, latent_dim] f32   (PyTorch nn.Linear layout: [out, in])
    b1 : [nf]             f32
    w2 : [1, nf]          f32
    b2 : [1]              f32
    Returns validity [B, 1] f32.
    """
    B, L = z.shape
    nf = w1.shape[0]

    # Batch tile: as large as block_b allows (amortizes per-step overhead and
    # widens the lane-dense output store), but capped so the grid keeps >= 2
    # steps whenever B allows it -- v7x's two TensorCores both get work.
    tb = min(block_b, _round_up(pl.cdiv(B, 2), 128))
    tb = max(tb, 128)
    grid = (pl.cdiv(B, tb),)   # ragged tail handled by Pallas boundary masking

    # Weights/biases are tiny (nf*L elements); any casts/reshapes here are
    # negligible next to the z stream.
    w1_in = w1 if w1.dtype == z.dtype else w1.astype(z.dtype)
    b1_col = b1.reshape(nf, 1).astype(jnp.float32)
    w2_row = w2.reshape(1, nf).astype(jnp.float32)
    b2_sc = b2.reshape(1, 1).astype(jnp.float32)

    out_t = pl.pallas_call(
        _disc_kernel,
        out_shape=jax.ShapeDtypeStruct((1, B), jnp.float32),
        grid=grid,
        in_specs=[
            # z batch tiles stream through VMEM, double-buffered by Pallas.
            # If a profile ever shows exposed DMA at tile boundaries, add
            # pipeline_mode=pl.Buffered(3) to THIS spec only.
            pl.BlockSpec((tb, L), lambda i: (i, 0)),
            # Weights / bias column: tiny, stay resident (constant index map).
            pl.BlockSpec((nf, L), lambda i: (0, 0)),
            pl.BlockSpec((nf, 1), lambda i: (0, 0)),
            pl.BlockSpec((1, nf), lambda i: (0, 0)),
            # Scalar second-layer bias lives in SMEM.
            pl.BlockSpec(memory_space=pltpu.MemorySpace.SMEM),
        ],
        out_specs=pl.BlockSpec((1, tb), lambda i: (0, i)),
        compiler_params=pltpu.CompilerParams(
            # Batch tiles are independent -> shard across v7x's 2 TensorCores.
            dimension_semantics=("parallel",)),
    )(z, w1_in, b1_col, w2_row, b2_sc)

    # [1, B] -> [B, 1]; size-1 leading dim makes this a free reshape.
    return out_t.reshape(B, 1)


def init_params(key, latent_dim, nf):
    """Deterministic init mimicking nn.Linear's U(-1/sqrt(fan_in), 1/sqrt(fan_in)),
    stored in PyTorch layout (weight: [out_features, in_features])."""
    k1, k2, k3, k4 = jax.random.split(key, 4)
    bound1 = 1.0 / jnp.sqrt(latent_dim)
    bound2 = 1.0 / jnp.sqrt(nf)
    w1 = jax.random.uniform(k1, (nf, latent_dim), jnp.float32, -bound1, bound1)
    b1 = jax.random.uniform(k2, (nf,), jnp.float32, -bound1, bound1)
    w2 = jax.random.uniform(k3, (1, nf), jnp.float32, -bound2, bound2)
    b2 = jax.random.uniform(k4, (1,), jnp.float32, -bound2, bound2)
    return w1, b1, w2, b2


def reference_forward(z, w1, b1, w2, b2):
    z = z.astype(jnp.float32)
    h = z @ w1.T + b1
    h = jnp.where(h > 0, h, 0.2 * h)
    logit = h @ w2.T + b2
    return jax.nn.sigmoid(logit)


if __name__ == "__main__":
    latent_dim = 16
    nf = 32
    batch = 300  # non-multiple of 128: exercises the ragged tail + 2-step grid

    key = jax.random.PRNGKey(0)
    kz, kp = jax.random.split(key)
    z = jax.random.normal(kz, (batch, latent_dim), jnp.float32)
    w1, b1, w2, b2 = init_params(kp, latent_dim, nf)

    ref = reference_forward(z, w1, b1, w2, b2)

    # f32 path (default tile -> tb=256 here, grid of 2 with a partial tail).
    out = discriminator_forward(z, w1, b1, w2, b2)
    out = jax.block_until_ready(out)
    assert out.shape == (batch, 1)
    # NOTE: pl.reciprocal(approx=True) in the sigmoid adds ~1e-3-scale relative
    # error vs exact f32 sigmoid; acceptable for a GAN discriminator.
    assert jnp.allclose(out, ref, atol=2e-3, rtol=2e-3), "f32 mismatch vs reference"

    # bf16 path: only when the producer already materializes z in bf16
    # (simulated here by the cast below); no wrapper-side cast in the kernel's
    # own wrapper.  Accumulation / post-matmul math stay f32.
    z_bf16 = z.astype(jnp.bfloat16)
    out_bf16 = discriminator_forward(z_bf16, w1, b1, w2, b2)
    out_bf16 = jax.block_until_ready(out_bf16)
    assert jnp.allclose(out_bf16, ref, atol=2e-2, rtol=2e-2), "bf16 mismatch vs reference"

    print("KERNEL_OK")
</pallas_src>

<mosaic_0001>
module attributes {stable_mosaic.version = 11 : i64} {
  func.func @_disc_kernel(%arg0: i32, %arg1: memref<256x16xf32, #tpu.memory_space<vmem>>, %arg2: memref<32x16xf32, #tpu.memory_space<vmem>>, %arg3: memref<32x1xf32, #tpu.memory_space<vmem>>, %arg4: memref<1x32xf32, #tpu.memory_space<vmem>>, %arg5: memref<1x1xf32, #tpu.memory_space<smem>>, %arg6: memref<1x256xf32, #tpu.memory_space<vmem>>) attributes {dimension_semantics = [#tpu.dimension_semantics<parallel>], iteration_bounds = array<i64: 2>, scalar_prefetch = 0 : i64, scratch_operands = 0 : i64, tpu.core_type = #tpu.core_type<tc>, window_params = [{transform_indices = @transform_0, window_bounds = array<i64: 256, 16>}, {pipeline_mode = #tpu.pipeline_mode<synchronous>, transform_indices = @transform_1, window_bounds = array<i64: 32, 16>}, {pipeline_mode = #tpu.pipeline_mode<synchronous>, transform_indices = @transform_2, window_bounds = array<i64: 32, 1>}, {pipeline_mode = #tpu.pipeline_mode<synchronous>, transform_indices = @transform_3, window_bounds = array<i64: 1, 32>}, {transform_indices = @transform_4, window_bounds = array<i64: 1, 1>}, {transform_indices = @transform_5, window_bounds = array<i64: 1, 256>}]} {
    %c0 = arith.constant 0 : index
    %c0_0 = arith.constant 0 : index
    %0 = vector.load %arg2[%c0, %c0_0] : memref<32x16xf32, #tpu.memory_space<vmem>>, vector<32x16xf32>
    %c0_1 = arith.constant 0 : index
    %c0_2 = arith.constant 0 : index
    %1 = vector.load %arg1[%c0_1, %c0_2] : memref<256x16xf32, #tpu.memory_space<vmem>>, vector<256x16xf32>
    %cst = arith.constant dense<0.000000e+00> : vector<32x256xf32>
    %2 = tpu.matmul %0, %1, %cst {dimension_numbers = #tpu.dot_dimension_numbers<[1], [1], [0], [0], [0, 0, 1, 0], [], []>} : vector<32x16xf32>, vector<256x16xf32>, vector<32x256xf32> -> vector<32x256xf32>
    %c0_3 = arith.constant 0 : index
    %c0_4 = arith.constant 0 : index
    %3 = vector.load %arg3[%c0_3, %c0_4] : memref<32x1xf32, #tpu.memory_space<vmem>>, vector<32x1xf32>
    %4 = vector.broadcast %3 : vector<32x1xf32> to vector<32x256xf32>
    %5 = arith.addf %2, %4 : vector<32x256xf32>
    %cst_5 = arith.constant 0.000000e+00 : f32
    %6 = vector.broadcast %cst_5 : f32 to vector<32x256xf32>
    %7 = arith.cmpf ogt, %5, %6 : vector<32x256xf32>
    %cst_6 = arith.constant 2.000000e-01 : f32
    %8 = vector.broadcast %cst_6 : f32 to vector<32x256xf32>
    %9 = arith.mulf %8, %5 : vector<32x256xf32>
    %10 = arith.select %7, %5, %9 : vector<32x256xi1>, vector<32x256xf32>
    %c0_7 = arith.constant 0 : index
    %c0_8 = arith.constant 0 : index
    %11 = vector.load %arg4[%c0_7, %c0_8] : memref<1x32xf32, #tpu.memory_space<vmem>>, vector<1x32xf32>
    %cst_9 = arith.constant dense<0.000000e+00> : vector<1x256xf32>
    %12 = tpu.matmul %11, %10, %cst_9 {dimension_numbers = #tpu.dot_dimension_numbers<[1], [0], [0], [1], [0, 0, 1, 1], [], []>} : vector<1x32xf32>, vector<32x256xf32>, vector<1x256xf32> -> vector<1x256xf32>
    %c0_10 = arith.constant 0 : index
    %c0_11 = arith.constant 0 : index
    %13 = memref.load %arg5[%c0_10, %c0_11] : memref<1x1xf32, #tpu.memory_space<smem>>
    %14 = vector.broadcast %13 : f32 to vector<1x256xf32>
    %15 = arith.addf %12, %14 : vector<1x256xf32>
    %cst_12 = arith.constant 0.000000e+00 : f32
    %16 = vector.broadcast %cst_12 : f32 to vector<1x256xf32>
    %17 = arith.subf %16, %15 : vector<1x256xf32>
    %18 = math.exp %17 : vector<1x256xf32>
    %cst_13 = arith.constant 1.000000e+00 : f32
    %19 = vector.broadcast %cst_13 : f32 to vector<1x256xf32>
    %20 = arith.addf %19, %18 : vector<1x256xf32>
    %21 = tpu.reciprocal %20 {approx = true} : vector<1x256xf32> -> vector<1x256xf32>
    %c0_14 = arith.constant 0 : index
    %c0_15 = arith.constant 0 : index
    %22 = vector.load %arg6[%c0_14, %c0_15] : memref<1x256xf32, #tpu.memory_space<vmem>>, vector<1x256xf32>
    tpu.vector_store %arg6[%c0_14, %c0_15], %21 {strides = array<i32>} : memref<1x256xf32, #tpu.memory_space<vmem>>, vector<1x256xf32>,
    return
  }
  func.func @transform_0(%arg0: i32) -> (i32, i32) {
    %c0_i32 = arith.constant 0 : i32
    %c0_i32_0 = arith.constant 0 : i32
    return %arg0, %c0_i32 : i32, i32
  }
  func.func @transform_1(%arg0: i32) -> (i32, i32) {
    %c0_i32 = arith.constant 0 : i32
    %c0_i32_0 = arith.constant 0 : i32
    %c0_i32_1 = arith.constant 0 : i32
    return %c0_i32, %c0_i32_0 : i32, i32
  }
  func.func @transform_2(%arg0: i32) -> (i32, i32) {
    %c0_i32 = arith.constant 0 : i32
    %c0_i32_0 = arith.constant 0 : i32
    %c0_i32_1 = arith.constant 0 : i32
    return %c0_i32, %c0_i32_0 : i32, i32
  }
  func.func @transform_3(%arg0: i32) -> (i32, i32) {
    %c0_i32 = arith.constant 0 : i32
    %c0_i32_0 = arith.constant 0 : i32
    %c0_i32_1 = arith.constant 0 : i32
    return %c0_i32, %c0_i32_0 : i32, i32
  }
  func.func @transform_4(%arg0: i32) -> (i32, i32) {
    %c0_i32 = arith.constant 0 : i32
    %c0_i32_0 = arith.constant 0 : i32
    %c0_i32_1 = arith.constant 0 : i32
    return %c0_i32, %c0_i32_0 : i32, i32
  }
  func.func @transform_5(%arg0: i32) -> (i32, i32) {
    %c0_i32 = arith.constant 0 : i32
    %c0_i32_0 = arith.constant 0 : i32
    return %c0_i32, %arg0 : i32, i32
  }
}

</mosaic_0001>

<llo_original>
// kernel: tpu_custom_call.1
$region0: #{tpu_custom_call.1}
  #allocation0 [shape = 'u32[]', space=smem, size = 0x4, offset = 0x4, fixed_abs, tag = 'smem constant byte address 0x4 - core index']
  #allocation1 [shape = 'u32[144,128]{1,0:T(1,128)}', space=vmem, size = 0x12000, scoped, tag = 'internal scratch']
  #allocation2 [shape = 'f32[1,1]{1,0:T(1,128)S(6)}', space=smem, size = 0x200, scoped, tag = 'scoped memory for tpu_custom_call.1']
  %s0 = inlined_call_operand.vmem [shape: f32[300,16], index: 0, kind: input, shape index: {}]
  %s1 = inlined_call_operand.vmem [shape: f32[32,16], index: 1, kind: input, shape index: {}]
  %s2 = inlined_call_operand.vmem [shape: f32[32,1], index: 2, kind: input, shape index: {}]
  %s3 = inlined_call_operand.vmem [shape: f32[1,32], index: 3, kind: input, shape index: {}]
  %s4 = inlined_call_operand.<no memory space> [shape: f32[1,1], index: 4, kind: input, shape index: {}]
  %s5 = inlined_call_operand.hbm [shape: f32[1,300], index: 5, kind: output, shape index: {}]
  %s6 = sld [smem:[#allocation0]]
  $region53: #{tpu_custom_call.1} parent=0
    _
  %s8 = ssub.s32 1, %s6
  %s9 = scalar_select 0, %s8, %s6
  %10 = sst [smem:[#allocation2]] %s4
  $region1: #{tpu_custom_call.1} parent=0
    #allocation3 [shape = 'u8[2048]{0}', space=vmem, size = 0x800, scoped, tag = 'output window, operand 0']
    #allocation4 [shape = 's32[2]{0}', space=sflag, size = 0x8, scoped, tag = 'scoped memory for tpu_custom_call.1']
    %11 = vsyncpa [#allocation4], 0
    %s12 = scalar_lea.sflag [#allocation4], 1
    %13 = vsyncpa %s12, 0
    loop: start=0, step=1, limit=4
    $region2: #{tpu_custom_call.1} parent=1 // loop_pre_header
      _
    $region3: #{tpu_custom_call.1} parent=1 // loop_header
      %s15 = sphi 0, %s19
      %p16 = scmp.ge.s32.totalorder %s15, 4
      %s25 = sphi 0, %s27
      %s28 = sphi 0, %s25
      %s29 = sphi 0, %s28
      %s45 = sphi 0, %s29
      %s49 = sphi 0, %s49
      %s51 = sphi 0, %s49
      %s52 = sphi 0, %s51
      %s66 = sphi 0, %s52
      %s70 = sphi 0, %s70
      %s72 = sphi 0, %s70
      %s73 = sphi 0, %s72
      %s87 = sphi 0, %s73
      %s91 = sphi 0, %s91
      %s93 = sphi 0, %s91
      %s94 = sphi 0, %s93
      %s108 = sphi 0, %s94
      %s112 = sphi 0, %s112
      %s114 = sphi 0, %s112
      %s115 = sphi 0, %s114
      %s129 = sphi 0, %s115
      %s135 = sphi 0, %s137
      %s138 = sphi 0, %s135
      %s139 = sphi 0, %s138
      %s155 = sphi 0, %s139
    $region4: #{tpu_custom_call.1} parent=1 // loop_header_branch
      %18 = sbr.rel (%p16) target = $region8
    $region5: #{tpu_custom_call.1} parent=1 // loop_body
      %s20 = ssub.s32 %s15, 1
      %s21 = ssub.s32 %s15, 2
      %s22 = sadd.s32 %s15, 1
      %s23 = ssub.s32 %s15, %s22
      %p24 = scmp.eq.s32.totalorder %s23, 0
      %s26 = sadd.s32 %s25, 1
      %s27 = scalar_select %p24, %s25, %s26
      %p30 = pneg %p24
      %p31 = scmp.eq.s32.totalorder %s15, 1
      %p32 = por %p30, %p31
      %p33 = scmp.ne.s32.totalorder %s25, %s28
      %p34 = scmp.eq.s32.totalorder %s15, 0
      %p35 = por %p33, %p34
      %p36 = scmp.ne.s32.totalorder %s25, %s28
      %p37 = scmp.eq.s32.totalorder %s20, 1
      %p38 = por %p36, %p37
      %p39 = scmp.ne.s32.totalorder %s28, %s29
      %p40 = scmp.eq.s32.totalorder %s20, 0
      %p41 = por %p39, %p40
      %p42 = scmp.ne.s32.totalorder %s28, %s29
      %p43 = scmp.eq.s32.totalorder %s21, 1
      %p44 = por %p42, %p43
      %p46 = scmp.ne.s32.totalorder %s29, %s45
      %p47 = scmp.eq.s32.totalorder %s21, 0
      %p48 = por %p46, %p47
      %s50 = sadd.s32 %s49, 1
      %p53 = scmp.eq.s32.totalorder %s15, 1
      %p54 = scmp.ne.s32.totalorder %s49, %s51
      %p55 = scmp.eq.s32.totalorder %s15, 0
      %p56 = por %p54, %p55
      %p57 = scmp.ne.s32.totalorder %s49, %s51
      %p58 = scmp.eq.s32.totalorder %s20, 1
      %p59 = por %p57, %p58
      %p60 = scmp.ne.s32.totalorder %s51, %s52
      %p61 = scmp.eq.s32.totalorder %s20, 0
      %p62 = por %p60, %p61
      %p63 = scmp.ne.s32.totalorder %s51, %s52
      %p64 = scmp.eq.s32.totalorder %s21, 1
      %p65 = por %p63, %p64
      %p67 = scmp.ne.s32.totalorder %s52, %s66
      %p68 = scmp.eq.s32.totalorder %s21, 0
      %p69 = por %p67, %p68
      %s71 = sadd.s32 %s70, 1
      %p74 = scmp.eq.s32.totalorder %s15, 1
      %p75 = scmp.ne.s32.totalorder %s70, %s72
      %p76 = scmp.eq.s32.totalorder %s15, 0
      %p77 = por %p75, %p76
      %p78 = scmp.ne.s32.totalorder %s70, %s72
      %p79 = scmp.eq.s32.totalorder %s20, 1
      %p80 = por %p78, %p79
      %p81 = scmp.ne.s32.totalorder %s72, %s73
      %p82 = scmp.eq.s32.totalorder %s20, 0
      %p83 = por %p81, %p82
      %p84 = scmp.ne.s32.totalorder %s72, %s73
      %p85 = scmp.eq.s32.totalorder %s21, 1
      %p86 = por %p84, %p85
      %p88 = scmp.ne.s32.totalorder %s73, %s87
      %p89 = scmp.eq.s32.totalorder %s21, 0
      %p90 = por %p88, %p89
      %s92 = sadd.s32 %s91, 1
      %p95 = scmp.eq.s32.totalorder %s15, 1
      %p96 = scmp.ne.s32.totalorder %s91, %s93
      %p97 = scmp.eq.s32.totalorder %s15, 0
      %p98 = por %p96, %p97
      %p99 = scmp.ne.s32.totalorder %s91, %s93
      %p100 = scmp.eq.s32.totalorder %s20, 1
      %p101 = por %p99, %p100
      %p102 = scmp.ne.s32.totalorder %s93, %s94
      %p103 = scmp.eq.s32.totalorder %s20, 0
      %p104 = por %p102, %p103
      %p105 = scmp.ne.s32.totalorder %s93, %s94
      %p106 = scmp.eq.s32.totalorder %s21, 1
      %p107 = por %p105, %p106
      %p109 = scmp.ne.s32.totalorder %s94, %s108
      %p110 = scmp.eq.s32.totalorder %s21, 0
      %p111 = por %p109, %p110
      %s113 = sadd.s32 %s112, 1
      %p116 = scmp.eq.s32.totalorder %s15, 1
      %p117 = scmp.ne.s32.totalorder %s112, %s114
      %p118 = scmp.eq.s32.totalorder %s15, 0
      %p119 = por %p117, %p118
      %p120 = scmp.ne.s32.totalorder %s112, %s114
      %p121 = scmp.eq.s32.totalorder %s20, 1
      %p122 = por %p120, %p121
      %p123 = scmp.ne.s32.totalorder %s114, %s115
      %p124 = scmp.eq.s32.totalorder %s20, 0
      %p125 = por %p123, %p124
      %p126 = scmp.ne.s32.totalorder %s114, %s115
      %p127 = scmp.eq.s32.totalorder %s21, 1
      %p128 = por %p126, %p127
      %p130 = scmp.ne.s32.totalorder %s115, %s129
      %p131 = scmp.eq.s32.totalorder %s21, 0
      %p132 = por %p130, %p131
      %s133 = ssub.s32 %s15, %s22
      %p134 = scmp.eq.s32.totalorder %s133, 0
      %s136 = sadd.s32 %s135, 1
      %s137 = scalar_select %p134, %s135, %s136
      %p140 = pneg %p134
      %p141 = scmp.eq.s32.totalorder %s15, 1
      %p142 = por %p140, %p141
      %p143 = scmp.ne.s32.totalorder %s135, %s138
      %p144 = scmp.eq.s32.totalorder %s15, 0
      %p145 = por %p143, %p144
      %p146 = scmp.ne.s32.totalorder %s135, %s138
      %p147 = scmp.eq.s32.totalorder %s20, 1
      %p148 = por %p146, %p147
      %p149 = scmp.ne.s32.totalorder %s138, %s139
      %p150 = scmp.eq.s32.totalorder %s20, 0
      %p151 = por %p149, %p150
      %p152 = scmp.ne.s32.totalorder %s138, %s139
      %p153 = scmp.eq.s32.totalorder %s21, 1
      %p154 = por %p152, %p153
      %p156 = scmp.ne.s32.totalorder %s139, %s155
      %p157 = scmp.eq.s32.totalorder %s21, 0
      %p158 = por %p156, %p157
      %p159 = scmp.le.s32.totalorder 1, %s15
      %p160 = scmp.lt.s32.totalorder %s15, 3
      %p161 = pnand %p159, %p160
      %p162 = pneg %p161
      // Predicated region
      $region9: #{tpu_custom_call.1} parent=5 // pred_check
        _
      $region10: #{tpu_custom_call.1} parent=5 // pred_check_branch
        %164 = sbr.rel (%p161) target = $region12
      $region11: #{tpu_custom_call.1} parent=5 // pred_region
        %s165 = ssub.s32 %s15, 1
        // Predicated region
        $region13: #{tpu_custom_call.1} parent=11 // pred_check
          %p166 = pneg %p62
        $region14: #{tpu_custom_call.1} parent=11 // pred_check_branch
          %168 = sbr.rel (%p166) target = $region16
        $region15: #{tpu_custom_call.1} parent=11 // pred_region
          _
        $region16: #{tpu_custom_call.1} parent=11 // pred_fallthru
          _
        // Predicated region
        $region17: #{tpu_custom_call.1} parent=11 // pred_check
          %p169 = pneg %p83
        $region18: #{tpu_custom_call.1} parent=11 // pred_check_branch
          %171 = sbr.rel (%p169) target = $region20
        $region19: #{tpu_custom_call.1} parent=11 // pred_region
          _
        $region20: #{tpu_custom_call.1} parent=11 // pred_fallthru
          _
        // Predicated region
        $region21: #{tpu_custom_call.1} parent=11 // pred_check
          %p172 = pneg %p104
        $region22: #{tpu_custom_call.1} parent=11 // pred_check_branch
          %174 = sbr.rel (%p172) target = $region24
        $region23: #{tpu_custom_call.1} parent=11 // pred_region
          _
        $region24: #{tpu_custom_call.1} parent=11 // pred_fallthru
          _
        // Predicated region
        $region25: #{tpu_custom_call.1} parent=11 // pred_check
          %p175 = pneg %p125
        $region26: #{tpu_custom_call.1} parent=11 // pred_check_branch
          %177 = sbr.rel (%p175) target = $region28
        $region27: #{tpu_custom_call.1} parent=11 // pred_region
          _
        $region28: #{tpu_custom_call.1} parent=11 // pred_fallthru
          _
      $region12: #{tpu_custom_call.1} parent=5 // pred_fallthru
        _
      %p178 = scmp.lt.s32.totalorder %s15, 2
      // Predicated region
      $region29: #{tpu_custom_call.1} parent=5 // pred_check
        %p179 = pneg %p178
      $region30: #{tpu_custom_call.1} parent=5 // pred_check_branch
        %181 = sbr.rel (%p179) target = $region32
      $region31: #{tpu_custom_call.1} parent=5 // pred_region
        // Predicated region
        $region33: #{tpu_custom_call.1} parent=31 // pred_check
          %p182 = pneg %p35
        $region34: #{tpu_custom_call.1} parent=31 // pred_check_branch
          %184 = sbr.rel (%p182) target = $region36
        $region35: #{tpu_custom_call.1} parent=31 // pred_region
          %s185 = smul.u32 32, %s15
          %s186 = ssub.s32 38, %s185
          %p187 = scmp.lt.s32.totalorder %s186, 32
          %s188 = scalar_select %p187, %s186, 32
          %s189 = smul.u32 128, %s188
          %p190 = scmp.lt.s32.totalorder %s185, 37
          %s191 = scalar_select %p190, %s185, 37
          %s192 = smul.addr %s191, 8
          %s193 = scalar_lea.vmem %s0, %s192
          %s194 = smul.u32 32, %s15
          %s195 = ssub.s32 38, %s194
          %p196 = scmp.lt.s32.totalorder %s195, 32
          %s197 = scalar_select %p196, %s195, 32
          %s198 = smul.u32 128, %s197
        $region36: #{tpu_custom_call.1} parent=31 // pred_fallthru
          _
      $region32: #{tpu_custom_call.1} parent=5 // pred_fallthru
        _
      %p199 = scmp.le.s32.totalorder 1, %s15
      %p200 = scmp.lt.s32.totalorder %s15, 3
      %p201 = pnand %p199, %p200
      %p202 = pneg %p201
      // Predicated region
      $region37: #{tpu_custom_call.1} parent=5 // pred_check
        _
      $region38: #{tpu_custom_call.1} parent=5 // pred_check_branch
        %204 = sbr.rel (%p201) target = $region40
      $region39: #{tpu_custom_call.1} parent=5 // pred_region
        %s205 = ssub.s32 %s15, 1
        %s206 = smul.u32 32, %s20
        %s207 = ssub.s32 38, %s206
        %p208 = scmp.lt.s32.totalorder %s207, 32
        %s209 = scalar_select %p208, %s207, 32
        %s210 = smul.u32 128, %s209
        %p211 = scmp.lt.s32.totalorder %s206, 37
        %s212 = scalar_select %p211, %s206, 37
        %s213 = smul.addr %s212, 8
        %s214 = scalar_lea.vmem %s0, %s213
        %p215 = pneg %p41
        %p216 = pneg %p38
        %p217 = pneg %p62
        %p218 = pneg %p59
        %p219 = pneg %p83
        %p220 = pneg %p80
        %p221 = pneg %p104
        %p222 = pneg %p101
        %p223 = pneg %p125
        %p224 = pneg %p122
        %p225 = pneg %p151
        %p226 = pneg %p148
        %s227 = sand.u32 %s138, 1
        %s228 = scalar_lea.sflag [#allocation4], %s227
        %s229 = sand.u32 %s138, 1
        %s230 = smul.addr %s229, 2
        %s231 = scalar_lea.vmem [#allocation3], %s230
        %s232 = smul.u32 32, %s20
        %s233 = ssub.s32 38, %s232
        %p234 = scmp.lt.s32.totalorder %s233, 32
        %s235 = scalar_select %p234, %s233, 32
        %s236 = smul.u32 128, %s235
        %p237 = scmp.lt.s32.totalorder %s232, 37
        %s238 = scalar_select %p237, %s232, 37
        %s239 = smul.addr %s238, 8
        %s240 = scalar_lea.vmem %s0, %s239
        %s241 = smul.u32 32, %s20
        %s242 = ssub.s32 38, %s241
        %p243 = scmp.lt.s32.totalorder %s242, 32
        %s244 = scalar_select %p243, %s242, 32
        %s245 = smul.u32 128, %s244
        %s246 = smul.u32 2, %s20
        %s247 = ssub.s32 3, %s246
        %p248 = scmp.lt.s32.totalorder %s247, 2
        %s249 = scalar_select %p248, %s247, 2
        %s250 = smul.u32 16, %s249
        %v251 = vld [vmem:[%s1] sm:$0xff]
        %v252 = vld [vmem:[%s1 + $0x8] sm:$0xff]
        %v253 = vld [vmem:[%s1 + $0x10] sm:$0xff]
        %v254 = vld [vmem:[%s1 + $0x18] sm:$0xff]
        %v255 = vld [vmem:[%s240] sm:$0xff]
        %v256 = vld [vmem:[%s240 + $0x8] sm:$0xff]
        %v257 = vld [vmem:[%s240 + $0x10] sm:$0xff]
        %v258 = vld [vmem:[%s240 + $0x18] sm:$0xff]
        %v259 = vld [vmem:[%s240 + $0x20] sm:$0xff]
        %v260 = vld [vmem:[%s240 + $0x28] sm:$0xff]
        %v261 = vld [vmem:[%s240 + $0x30] sm:$0xff]
        %v262 = vld [vmem:[%s240 + $0x38] sm:$0xff]
        %v263 = vld [vmem:[%s240 + $0x40] sm:$0xff]
        %v264 = vld [vmem:[%s240 + $0x48] sm:$0xff]
        %v265 = vld [vmem:[%s240 + $0x50] sm:$0xff]
        %v266 = vld [vmem:[%s240 + $0x58] sm:$0xff]
        %v267 = vld [vmem:[%s240 + $0x60] sm:$0xff]
        %v268 = vld [vmem:[%s240 + $0x68] sm:$0xff]
        %v269 = vld [vmem:[%s240 + $0x70] sm:$0xff]
        %v270 = vld [vmem:[%s240 + $0x78] sm:$0xff]
        %v271 = vld [vmem:[%s240 + $0x80] sm:$0xff]
        %v272 = vld [vmem:[%s240 + $0x88] sm:$0xff]
        %v273 = vld [vmem:[%s240 + $0x90] sm:$0xff]
        %v274 = vld [vmem:[%s240 + $0x98] sm:$0xff]
        %v275 = vld [vmem:[%s240 + $0xa0] sm:$0xff]
        %v276 = vld [vmem:[%s240 + $0xa8] sm:$0xff]
        %v277 = vld [vmem:[%s240 + $0xb0] sm:$0xff]
        %v278 = vld [vmem:[%s240 + $0xb8] sm:$0xff]
        %v279 = vld [vmem:[%s240 + $0xc0] sm:$0xff]
        %v280 = vld [vmem:[%s240 + $0xc8] sm:$0xff]
        %v281 = vld [vmem:[%s240 + $0xd0] sm:$0xff]
        %v282 = vld [vmem:[%s240 + $0xd8] sm:$0xff]
        %v283 = vld [vmem:[%s240 + $0xe0] sm:$0xff]
        %v284 = vld [vmem:[%s240 + $0xe8] sm:$0xff]
        %v285 = vld [vmem:[%s240 + $0xf0] sm:$0xff]
        %v286 = vld [vmem:[%s240 + $0xf8] sm:$0xff]
        %v287 = vld [vmem:[%s2] sm:$0xff]
        %v288 = vld [vmem:[%s2 + $0x8] sm:$0xff]
        %v289 = vld [vmem:[%s2 + $0x10] sm:$0xff]
        %v290 = vld [vmem:[%s2 + $0x18] sm:$0xff]
        %292 = vset.pattern.permute.xlu0 0
        %293 = vperm.xlu0 %292, %v287
        %v294 = vpop.permute.xlu0 %293
        %297 = vset.pattern.permute.xlu0 0
        %298 = vperm.xlu0 %297, %v288
        %v299 = vpop.permute.xlu0 %298
        %302 = vset.pattern.permute.xlu0 0
        %303 = vperm.xlu0 %302, %v289
        %v304 = vpop.permute.xlu0 %303
        %307 = vset.pattern.permute.xlu0 0
        %308 = vperm.xlu0 %307, %v290
        %v309 = vpop.permute.xlu0 %308
        %vm311 = vcmask 130048
        %v313 = vsel %vm311, %v251, 0
        %v316 = vsel %vm311, %v252, 0
        %v319 = vsel %vm311, %v253, 0
        %v322 = vsel %vm311, %v254, 0
        %v325 = vsel %vm311, %v255, 0
        %v328 = vsel %vm311, %v256, 0
        %v331 = vsel %vm311, %v257, 0
        %v334 = vsel %vm311, %v258, 0
        %v337 = vsel %vm311, %v259, 0
        %v340 = vsel %vm311, %v260, 0
        %v343 = vsel %vm311, %v261, 0
        %v346 = vsel %vm311, %v262, 0
        %v349 = vsel %vm311, %v263, 0
        %v352 = vsel %vm311, %v264, 0
        %v355 = vsel %vm311, %v265, 0
        %v358 = vsel %vm311, %v266, 0
        %v361 = vsel %vm311, %v267, 0
        %v364 = vsel %vm311, %v268, 0
        %v367 = vsel %vm311, %v269, 0
        %v370 = vsel %vm311, %v270, 0
        %v373 = vsel %vm311, %v271, 0
        %v376 = vsel %vm311, %v272, 0
        %v379 = vsel %vm311, %v273, 0
        %v382 = vsel %vm311, %v274, 0
        %v385 = vsel %vm311, %v275, 0
        %v388 = vsel %vm311, %v276, 0
        %v391 = vsel %vm311, %v277, 0
        %v394 = vsel %vm311, %v278, 0
        %v397 = vsel %vm311, %v279, 0
        %v400 = vsel %vm311, %v280, 0
        %v403 = vsel %vm311, %v281, 0
        %v406 = vsel %vm311, %v282, 0
        %v409 = vsel %vm311, %v283, 0
        %v412 = vsel %vm311, %v284, 0
        %v415 = vsel %vm311, %v285, 0
        %v418 = vsel %vm311, %v286, 0
        %420 = vmatprep.subr.mxu0 0.0
        %421 = vmatpush1.xpose.msra.mxu0 %v325
        %422 = vmatprep.subr.mxu0 0.0
        %423 = vmatpush1.xpose.msra.mxu0 %v328
        %424 = vmatprep.subr.mxu0 0.0
        %425 = vmatpush1.xpose.msra.mxu0 %v331
        %426 = vmatprep.subr.mxu0 0.0
        %427 = vmatpush1.xpose.msra.mxu0 %v334
        %428 = vmatprep.subr.mxu0 0.0
        %429 = vmatpush1.xpose.msra.mxu0 %v337
        %430 = vmatprep.subr.mxu0 0.0
        %431 = vmatpush1.xpose.msra.mxu0 %v340
        %432 = vmatprep.subr.mxu0 0.0
        %433 = vmatpush1.xpose.msra.mxu0 %v343
        %434 = vmatprep.subr.mxu0 0.0
        %435 = vmatpush1.xpose.msra.mxu0 %v346
        %436 = vmatprep.subr.mxu0 0.0
        %437 = vmatpush1.xpose.msra.mxu0 %v349
        %438 = vmatprep.subr.mxu0 0.0
        %439 = vmatpush1.xpose.msra.mxu0 %v352
        %440 = vmatprep.subr.mxu0 0.0
        %441 = vmatpush1.xpose.msra.mxu0 %v355
        %442 = vmatprep.subr.mxu0 0.0
        %443 = vmatpush1.xpose.msra.mxu0 %v358
        %444 = vmatprep.subr.mxu0 0.0
        %445 = vmatpush1.xpose.msra.mxu0 %v361
        %446 = vmatprep.subr.mxu0 0.0
        %447 = vmatpush1.xpose.msra.mxu0 %v364
        %448 = vmatprep.subr.mxu0 0.0
        %449 = vmatpush1.xpose.msra.mxu0 %v367
        %450 = vmatprep.subr.mxu0 0.0
        %451 = vmatpush1.xpose.msra.mxu0 %v370
        %452 = vmatprep.subr.mxu0 0.0
        %453 = vmatpush1.xpose.msra.mxu0 %v373
        %454 = vmatprep.subr.mxu0 0.0
        %455 = vmatpush1.xpose.msra.mxu0 %v376
        %456 = vmatprep.subr.mxu0 0.0
        %457 = vmatpush1.xpose.msra.mxu0 %v379
        %458 = vmatprep.subr.mxu0 0.0
        %459 = vmatpush1.xpose.msra.mxu0 %v382
        %460 = vmatprep.subr.mxu0 0.0
        %461 = vmatpush1.xpose.msra.mxu0 %v385
        %462 = vmatprep.subr.mxu0 0.0
        %463 = vmatpush1.xpose.msra.mxu0 %v388
        %464 = vmatprep.subr.mxu0 0.0
        %465 = vmatpush1.xpose.msra.mxu0 %v391
        %466 = vmatprep.subr.mxu0 0.0
        %467 = vmatpush1.xpose.msra.mxu0 %v394
        %468 = vmatprep.subr.mxu0 0.0
        %469 = vmatpush1.xpose.msra.mxu0 %v397
        %470 = vmatprep.subr.mxu0 0.0
        %471 = vmatpush1.xpose.msra.mxu0 %v400
        %472 = vmatprep.subr.mxu0 0.0
        %473 = vmatpush1.xpose.msra.mxu0 %v403
        %474 = vmatprep.subr.mxu0 0.0
        %475 = vmatpush1.xpose.msra.mxu0 %v406
        %476 = vmatprep.subr.mxu0 0.0
        %477 = vmatpush1.xpose.msra.mxu0 %v409
        %478 = vmatprep.subr.mxu0 0.0
        %479 = vmatpush1.xpose.msra.mxu0 %v412
        %480 = vmatprep.subr.mxu0 0.0
        %481 = vmatpush1.xpose.msra.mxu0 %v415
        %482 = vmatprep.subr.mxu0 0.0
        %483 = vmatpush1.xpose.msra.mxu0 %v418
        %484 = vmatprep.mubr.f32.mxu0 0.0
        %485 = vmatmul.mubr.f32.gmra.mrb[0].mxu0 %v313
        %v486 = vpop.f32.mrb[0].mxu0
        %v487 = vadd.f32 %v294, %v486
        %v488 = vpop.f32.mrb[0].mxu0
        %v489 = vadd.f32 %v294, %v488
        %490 = vmatprep.mubr.f32.mxu0 0.0
        %491 = vmatmul.mubr.f32.gmra.mrb[0].mxu0 %v316
        %v492 = vpop.f32.mrb[0].mxu0
        %v493 = vadd.f32 %v299, %v492
        %v494 = vpop.f32.mrb[0].mxu0
        %v495 = vadd.f32 %v299, %v494
        %496 = vmatprep.mubr.f32.mxu0 0.0
        %497 = vmatmul.mubr.f32.gmra.mrb[0].mxu0 %v319
        %v498 = vpop.f32.mrb[0].mxu0
        %v499 = vadd.f32 %v304, %v498
        %v500 = vpop.f32.mrb[0].mxu0
        %v501 = vadd.f32 %v304, %v500
        %502 = vmatprep.mubr.f32.mxu0 0.0
        %503 = vmatmul.mubr.f32.gmra.mrb[0].mxu0 %v322
        %v504 = vpop.f32.mrb[0].mxu0
        %v505 = vadd.f32 %v309, %v504
        %v506 = vpop.f32.mrb[0].mxu0
        %v507 = vadd.f32 %v309, %v506
        %508 = vdwg.mxu0
        %vm509 = vcmp.gt.f32.partialorder %v487, 0.0
        %vm510 = vcmp.gt.f32.partialorder %v489, 0.0
        %vm511 = vcmp.gt.f32.partialorder %v493, 0.0
        %vm512 = vcmp.gt.f32.partialorder %v495, 0.0
        %vm513 = vcmp.gt.f32.partialorder %v499, 0.0
        %vm514 = vcmp.gt.f32.partialorder %v501, 0.0
        %vm515 = vcmp.gt.f32.partialorder %v505, 0.0
        %vm516 = vcmp.gt.f32.partialorder %v507, 0.0
        %v517 = vmul.f32 %v487, 0.2
        %v518 = vmul.f32 %v489, 0.2
        %v519 = vmul.f32 %v493, 0.2
        %v520 = vmul.f32 %v495, 0.2
        %v521 = vmul.f32 %v499, 0.2
        %v522 = vmul.f32 %v501, 0.2
        %v523 = vmul.f32 %v505, 0.2
        %v524 = vmul.f32 %v507, 0.2
        %v525 = vsel %vm509, %v487, %v517
        %v526 = vsel %vm510, %v489, %v518
        %v527 = vsel %vm511, %v493, %v519
        %v528 = vsel %vm512, %v495, %v520
        %v529 = vsel %vm513, %v499, %v521
        %v530 = vsel %vm514, %v501, %v522
        %v531 = vsel %vm515, %v505, %v523
        %v532 = vsel %vm516, %v507, %v524
        %v533 = vld [vmem:[%s3] sm:$0x1]
        %s534 = sld [smem:[#allocation2]]
        %v535 = vstv %s534
        %vm536 = vcmask 261120
        %v538 = vsel %vm536, %v533, 0
        %540 = vmatprep.subr.mxu0 %v526
        %541 = vmatpush1.msra.mxu0 %v525
        %542 = vmatprep.subr.mxu0 %v528
        %543 = vmatpush1.msra.mxu0 %v527
        %544 = vmatprep.subr.mxu0 %v530
        %545 = vmatpush1.msra.mxu0 %v529
        %546 = vmatprep.subr.mxu0 %v532
        %547 = vmatpush1.msra.mxu0 %v531
        %548 = vmatprep.subr.mxu0 0.0
        %549 = vmatpush1.msra.mxu0 0.0
        %550 = vmatprep.subr.mxu0 0.0
        %551 = vmatpush1.msra.mxu0 0.0
        %552 = vmatprep.subr.mxu0 0.0
        %553 = vmatpush1.msra.mxu0 0.0
        %554 = vmatprep.subr.mxu0 0.0
        %555 = vmatpush1.msra.mxu0 0.0
        %556 = vmatprep.subr.mxu0 0.0
        %557 = vmatpush1.msra.mxu0 0.0
        %558 = vmatprep.subr.mxu0 0.0
        %559 = vmatpush1.msra.mxu0 0.0
        %560 = vmatprep.subr.mxu0 0.0
        %561 = vmatpush1.msra.mxu0 0.0
        %562 = vmatprep.subr.mxu0 0.0
        %563 = vmatpush1.msra.mxu0 0.0
        %564 = vmatprep.subr.mxu0 0.0
        %565 = vmatpush1.msra.mxu0 0.0
        %566 = vmatprep.subr.mxu0 0.0
        %567 = vmatpush1.msra.mxu0 0.0
        %568 = vmatprep.subr.mxu0 0.0
        %569 = vmatpush1.msra.mxu0 0.0
        %570 = vmatprep.subr.mxu0 0.0
        %571 = vmatpush1.msra.mxu0 0.0
        %572 = vmatprep.subr.mxu0 0.0
        %573 = vmatpush1.msra.mxu0 0.0
        %574 = vmatprep.subr.mxu0 0.0
        %575 = vmatpush1.msra.mxu0 0.0
        %576 = vmatprep.subr.mxu0 0.0
        %577 = vmatpush1.msra.mxu0 0.0
        %578 = vmatprep.subr.mxu0 0.0
        %579 = vmatpush1.msra.mxu0 0.0
        %580 = vmatprep.subr.mxu0 0.0
        %581 = vmatpush1.msra.mxu0 0.0
        %582 = vmatprep.subr.mxu0 0.0
        %583 = vmatpush1.msra.mxu0 0.0
        %584 = vmatprep.subr.mxu0 0.0
        %585 = vmatpush1.msra.mxu0 0.0
        %586 = vmatprep.subr.mxu0 0.0
        %587 = vmatpush1.msra.mxu0 0.0
        %588 = vmatprep.subr.mxu0 0.0
        %589 = vmatpush1.msra.mxu0 0.0
        %590 = vmatprep.subr.mxu0 0.0
        %591 = vmatpush1.msra.mxu0 0.0
        %592 = vmatprep.subr.mxu0 0.0
        %593 = vmatpush1.msra.mxu0 0.0
        %594 = vmatprep.subr.mxu0 0.0
        %595 = vmatpush1.msra.mxu0 0.0
        %596 = vmatprep.subr.mxu0 0.0
        %597 = vmatpush1.msra.mxu0 0.0
        %598 = vmatprep.subr.mxu0 0.0
        %599 = vmatpush1.msra.mxu0 0.0
        %600 = vmatprep.subr.mxu0 0.0
        %601 = vmatpush1.msra.mxu0 0.0
        %602 = vmatprep.subr.mxu0 0.0
        %603 = vmatpush1.msra.mxu0 0.0
        %604 = vmatprep.mubr.f32.mxu0 0.0
        %605 = vmatmul.mubr.f32.gmra.mrb[0].mxu0 %v538
        %v606 = vpop.f32.mrb[0].mxu0
        %v607 = vadd.f32 %v535, %v606
        %v608 = vpop.f32.mrb[0].mxu0
        %v609 = vadd.f32 %v535, %v608
        %610 = vdwg.mxu0
        %v611 = vsub.f32 0.0, %v607
        %v612 = vsub.f32 0.0, %v609
        %v613 = vmul.f32 %v611, 1.442695
        %v614 = vpow.pop %v613
        %v615 = vmul.f32 %v612, 1.442695
        %v616 = vpow.pop %v615
        %v617 = vadd.f32 %v614, 1.0
        %v618 = vadd.f32 %v616, 1.0
        %v619 = vrcp.pop %v617
        %v620 = vrcp.pop %v618
        %v623 = vcombine.low %v619, %v620
        %v625 = vunpack.c.l.s4 1966171168
        %v626 = vunpack.c.0.s8 %v625
        %v627 = vlaneseq
        %v628 = vshrl.u32 %v627, 7
        %v629 = vsub.s32 %v626, %v628
        %v630 = vrot.slane %v623, %v629
        %v632 = vunpack.c.l.s4 1966171168
        %v633 = vunpack.c.0.s8 %v632
        %v634 = vlaneseq
        %v635 = vshrl.u32 %v634, 7
        %v636 = vsub.s32 %v633, %v635
        %v637 = vrot.slane %v630, %v636
        %v639 = vlaneseq
        %vm640 = vcmp.ge.s32.totalorder %v639, 0
        %vm641 = vcmp.lt.s32.totalorder %v639, 256
        %vm642 = vmand %vm640, %vm641
        %643 = vst.msk [vmem:[%s231] sm:$0x3] %vm642, %v637
        %s644 = sand.u32 %s138, 1
        %s645 = scalar_lea.sflag [#allocation4], %s644
        %s646 = sand.u32 %s138, 1
        %s647 = smul.addr %s646, 2
        %s648 = scalar_lea.vmem [#allocation3], %s647
        // Predicated region
        $region41: #{tpu_custom_call.1} parent=39 // pred_check
          %p649 = pneg %p148
        $region42: #{tpu_custom_call.1} parent=39 // pred_check_branch
          %651 = sbr.rel (%p649) target = $region44
        $region43: #{tpu_custom_call.1} parent=39 // pred_region
          %s652 = smul.u32 2, %s20
          %s653 = ssub.s32 3, %s652
          %p654 = scmp.lt.s32.totalorder %s653, 2
          %s655 = scalar_select %p654, %s653, 2
          %s656 = smul.u32 16, %s655
          %s658 = ssub.s32 32, %s656
          %659 = vsyncadd %s645, %s658
          %p660 = scmp.ne.s32.totalorder 0, %s656
          %s661 = smul.addr %s652, 16
          %s662 = scalar_lea.hbm %s5, %s661
          %s663 = sshll.u32 %s655, 4
          %s664 = sshll.u32 %s648, 4
          %s665 = int_to_ptr.vmem [resolvable:$true] %s664
          %667 = dma.vmem_to_hbm [thread:$0]  (%p660), %s665, %s663, %s662, %s645
        $region44: #{tpu_custom_call.1} parent=39 // pred_fallthru
          _
      $region40: #{tpu_custom_call.1} parent=5 // pred_fallthru
        _
      %p668 = scmp.le.s32.totalorder 2, %s15
      // Predicated region
      $region45: #{tpu_custom_call.1} parent=5 // pred_check
        %p669 = pneg %p668
      $region46: #{tpu_custom_call.1} parent=5 // pred_check_branch
        %671 = sbr.rel (%p669) target = $region48
      $region47: #{tpu_custom_call.1} parent=5 // pred_region
        %s672 = ssub.s32 %s15, 2
        // Predicated region
        $region49: #{tpu_custom_call.1} parent=47 // pred_check
          %p673 = pneg %p154
        $region50: #{tpu_custom_call.1} parent=47 // pred_check_branch
          %675 = sbr.rel (%p673) target = $region52
        $region51: #{tpu_custom_call.1} parent=47 // pred_region
          %s676 = sand.u32 %s139, 1
          %s677 = scalar_lea.sflag [#allocation4], %s676
          %s678 = sand.u32 %s139, 1
          %s679 = smul.addr %s678, 2
          %s680 = scalar_lea.vmem [#allocation3], %s679
          %681 = dma.done %s677, 32
        $region52: #{tpu_custom_call.1} parent=47 // pred_fallthru
          _
      $region48: #{tpu_custom_call.1} parent=5 // pred_fallthru
        _
    $region6: #{tpu_custom_call.1} parent=1 // loop_footer
      %s19 = sadd.s32 1, %s15
    $region7: #{tpu_custom_call.1} parent=1 // loop_footer_branch
      %14 = sbr.rel target = $region3
    $region8: #{tpu_custom_call.1} parent=1 // loop_exit
      _
    %682 = vsyncpa [#allocation4], 1
    %s683 = scalar_lea.sflag [#allocation4], 1
    %684 = vsyncpa %s683, 1

</llo_original>
